<compile_context>
chip_gen: v7x
topology: tpu7x:2x2x1
jax: 0.10.0
libtpu: 0.0.40
codegen_flags: <defaults>
</compile_context>

<pallas_src>
import numpy as np
import jax
import jax.numpy as jnp
from jax import lax
from jax.experimental import pallas as pl
from jax.experimental.pallas import tpu as pltpu


def _vmem_limit_bytes():
    """Scoped-VMEM limit sized from the actual chip (128 MiB v5e/v6e, 64 MiB v7x)."""
    try:
        cap = pltpu.get_tpu_info().vmem_capacity_bytes
    except Exception:
        cap = 64 * 1024 * 1024          # conservative fallback: v7x physical VMEM
    return max(32 * 1024 * 1024, min(int(cap * 0.75), 96 * 1024 * 1024))


def _pick_batch_tile(n, per_elem_bytes, budget_bytes):
    """Largest divisor of n whose block fits the VMEM budget; keep >=2 grid steps when that
    costs at most a 2x smaller tile (v7x: 2 TensorCores shard the 'parallel' grid axis)."""
    divs = [d for d in range(1, n + 1) if n % d == 0]
    fit = [d for d in divs if d * per_elem_bytes <= budget_bytes] or [1]
    tb = max(fit)
    multi = [d for d in fit if n // d >= 2]
    if multi and max(multi) * 2 >= tb:
        tb = max(multi)
    return tb


def make_kernel(TB, L, C_in, max_pad, kernels, cdtype):
    """One batch tile: reflect halo + im2col built in VMEM, one batched MXU matmul, PReLU."""

    def kernel(x_ref, w_ref, a_ref, out_ref):
        w = w_ref[...]                                   # (C_out, K+1): clamped weights + bias col
        alpha = a_ref[...][None, :, :]                   # (1, C_out, 1) hoisted PReLU slopes (f32)
        x = x_ref[...]                                   # (TB, C_in, L) — L on lanes
        # Reflect halo constructed in VMEM (never written to HBM).
        left = [x[:, :, max_pad - j:max_pad - j + 1] for j in range(max_pad)]
        right = [x[:, :, L - 2 - j:L - 1 - j] for j in range(max_pad)]
        xp = jnp.concatenate(left + [x] + right, axis=-1) if max_pad else x   # (TB, C_in, Lp)
        # im2col rows in (branch, tap, channel) order — must match w_cat column order.
        cols = []
        for k in kernels:
            start = max_pad - (k - 1) // 2
            for t in range(k):
                cols.append(xp[:, :, start + t:start + t + L])    # static lane-window slice
        cols.append(jnp.ones((TB, 1, L), cdtype))                 # ones row -> folded bias
        xcol = jnp.concatenate(cols, axis=1)                      # (TB, K+1, L)
        # Single batched MXU matmul for the whole tile; weights stay resident.
        wb = jnp.broadcast_to(w[None], (TB,) + w.shape)           # (TB, C_out, K+1)
        y = lax.dot_general(wb, xcol,
                            dimension_numbers=(((2,), (1,)), ((0,), (0,))),
                            preferred_element_type=jnp.float32)   # (TB, C_out, L), f32 accum
        y = jnp.where(y > 0.0, y, alpha * y)                      # PReLU on the f32 accumulator
        out_ref[...] = y.astype(out_ref.dtype)                    # one full-tile store

    return kernel


def ted_conv1d(x_ncl, weights, biases, alphas, kernels, out_dtype=None):
    """x_ncl: (N, C_in, L). weights[i]: (co_i, C_in, k_i) torch layout; biases[i]: (co_i,)."""
    N, C_in, L = x_ncl.shape
    kernels = tuple(int(k) for k in kernels)
    if any(k % 2 == 0 for k in kernels):
        # Even k with pad=(k-1)//2 shortens the output; torch.cat in the original module fails.
        raise ValueError("Ted_Conv1d channel-concat requires odd kernel sizes.")
    out_channels = [int(w.shape[0]) for w in weights]
    C_out = sum(out_channels)
    max_pad = max((k - 1) // 2 for k in kernels)
    if max_pad >= L:
        raise ValueError("reflect padding requires max kernel pad < L")

    # Keep the HBM-facing dtype of x (bf16 halves HBM traffic on this memory-bound kernel).
    cdtype = x_ncl.dtype if x_ncl.dtype in (jnp.bfloat16, jnp.float32) else jnp.float32
    x = x_ncl if x_ncl.dtype == cdtype else x_ncl.astype(cdtype)
    out_dtype = cdtype if out_dtype is None else out_dtype

    # Block-diagonal weight with the ConstrainedConv1d clamp hoisted; bias folded as last column.
    # Column order = (branch, tap, in_channel) — must match the kernel's im2col build order.
    K_total = sum(kernels) * C_in
    w_cat = jnp.zeros((C_out, K_total + 1), jnp.float32)
    ooff = koff = 0
    for w, k, co in zip(weights, kernels, out_channels):
        wc = jnp.clip(jnp.asarray(w, jnp.float32), -1.0, 1.0)      # ConstrainedConv1d clamp
        wc = jnp.transpose(wc, (0, 2, 1)).reshape(co, k * C_in)    # (co, k*C_in), (tap, ch) order
        w_cat = w_cat.at[ooff:ooff + co, koff:koff + k * C_in].set(wc)
        ooff += co
        koff += k * C_in
    b_cat = jnp.concatenate([jnp.asarray(b, jnp.float32).reshape(-1) for b in biases])
    w_aug = w_cat.at[:, K_total].set(b_cat).astype(cdtype)         # (C_out, K_total+1)
    a_cat = jnp.concatenate([jnp.full((co,), a, jnp.float32)
                             for a, co in zip(alphas, out_channels)]).reshape(C_out, 1)

    # Size the batch tile from the VMEM budget: double-buffered input/output blocks plus the
    # in-kernel halo / im2col / f32-accumulator temporaries.
    csz = np.dtype(cdtype).itemsize
    osz = np.dtype(out_dtype).itemsize
    Lp = L + 2 * max_pad
    per_elem = (2 * C_in * L * csz + 2 * C_out * L * osz
                + (C_in * Lp + (K_total + 1) * L) * csz + C_out * L * 4)
    vmem_limit = _vmem_limit_bytes()
    w_bytes = 2 * C_out * (K_total + 1) * csz
    budget = max(per_elem, int(0.6 * vmem_limit) - w_bytes)
    TB = _pick_batch_tile(N, per_elem, budget)
    grid = (N // TB,)

    out = pl.pallas_call(
        make_kernel(TB, L, C_in, max_pad, kernels, cdtype),
        out_shape=jax.ShapeDtypeStruct((N, C_out, L), out_dtype),
        grid=grid,
        in_specs=[
            pl.BlockSpec((TB, C_in, L), lambda n: (n, 0, 0)),
            pl.BlockSpec((C_out, K_total + 1), lambda n: (0, 0)),
            pl.BlockSpec((C_out, 1), lambda n: (0, 0)),
        ],
        out_specs=pl.BlockSpec((TB, C_out, L), lambda n: (n, 0, 0)),
        compiler_params=pltpu.CompilerParams(
            dimension_semantics=("parallel",),
            vmem_limit_bytes=vmem_limit,
        ),
    )(x, w_aug, a_cat)
    return out                                   # (N, C_out_total, L)


def ref_ted_conv1d(x_ncl, weights, biases, alphas, kernels):
    """Pure-JAX reference (lax conv) mirroring the PyTorch forward."""
    outs = []
    for w, b, a, k in zip(weights, biases, alphas, kernels):
        pad = (k - 1) // 2
        xp = jnp.pad(x_ncl, ((0, 0), (0, 0), (pad, pad)), mode="reflect")
        y = lax.conv_general_dilated(
            xp, jnp.clip(w, -1.0, 1.0), window_strides=(1,), padding="VALID",
            dimension_numbers=("NCH", "OIH", "NCH"))
        y = y + b.reshape(1, -1, 1)
        y = jnp.where(y > 0, y, a * y)
        outs.append(y)
    return jnp.concatenate(outs, axis=-2)


if __name__ == "__main__":
    key = jax.random.PRNGKey(0)
    N, C_in, L = 2, 4, 16
    kernels = [1, 3, 5]            # odd kernels -> all branches keep length L (cat is valid)
    out_channels = [2, 3, 3]

    keys = jax.random.split(key, 1 + 2 * len(kernels))
    x = jax.random.normal(keys[0], (N, C_in, L), jnp.float32)
    weights, biases = [], []
    for i, (k, co) in enumerate(zip(kernels, out_channels)):
        weights.append(0.5 * jax.random.normal(keys[1 + 2 * i], (co, C_in, k), jnp.float32))
        biases.append(0.1 * jax.random.normal(keys[2 + 2 * i], (co,), jnp.float32))
    alphas = [0.25] * len(kernels)  # nn.PReLU() deterministic default init

    # f32 path (matches the PyTorch module's default dtype).
    y = ted_conv1d(x, weights, biases, alphas, kernels)
    jax.block_until_ready(y)
    y_ref = ref_ted_conv1d(x, weights, biases, alphas, kernels)
    assert y.shape == (N, sum(out_channels), L), y.shape
    assert jnp.allclose(y, y_ref, atol=1e-4, rtol=1e-4), float(jnp.max(jnp.abs(y - y_ref)))

    # bf16 HBM path (half the HBM bytes; f32 MXU accumulation). Compare against the same math
    # evaluated on identically bf16-quantized inputs / weights / bias.
    x_bf = x.astype(jnp.bfloat16)
    y_bf = ted_conv1d(x_bf, weights, biases, alphas, kernels, out_dtype=jnp.float32)
    jax.block_until_ready(y_bf)
    wq = [jnp.clip(w, -1.0, 1.0).astype(jnp.bfloat16).astype(jnp.float32) for w in weights]
    bq = [b.astype(jnp.bfloat16).astype(jnp.float32) for b in biases]
    y_bref = ref_ted_conv1d(x_bf.astype(jnp.float32), wq, bq, alphas, kernels)
    assert jnp.allclose(y_bf, y_bref, atol=2e-3, rtol=2e-3), \
        float(jnp.max(jnp.abs(y_bf - y_bref)))

    print("KERNEL_OK")
</pallas_src>

<mosaic_0001>
module attributes {stable_mosaic.version = 11 : i64} {
  func.func @kernel(%arg0: i32, %arg1: memref<1x4x16xf32, #tpu.memory_space<vmem>>, %arg2: memref<8x37xf32, #tpu.memory_space<vmem>>, %arg3: memref<8x1xf32, #tpu.memory_space<vmem>>, %arg4: memref<1x8x16xf32, #tpu.memory_space<vmem>>) attributes {dimension_semantics = [#tpu.dimension_semantics<parallel>], iteration_bounds = array<i64: 2>, scalar_prefetch = 0 : i64, scratch_operands = 0 : i64, tpu.core_type = #tpu.core_type<tc>, window_params = [{transform_indices = @transform_0, window_bounds = array<i64: 1, 4, 16>}, {pipeline_mode = #tpu.pipeline_mode<synchronous>, transform_indices = @transform_1, window_bounds = array<i64: 8, 37>}, {pipeline_mode = #tpu.pipeline_mode<synchronous>, transform_indices = @transform_2, window_bounds = array<i64: 8, 1>}, {transform_indices = @transform_3, window_bounds = array<i64: 1, 8, 16>}]} {
    %c0 = arith.constant 0 : index
    %c0_0 = arith.constant 0 : index
    %0 = vector.load %arg2[%c0, %c0_0] : memref<8x37xf32, #tpu.memory_space<vmem>>, vector<8x37xf32>
    %c0_1 = arith.constant 0 : index
    %c0_2 = arith.constant 0 : index
    %1 = vector.load %arg3[%c0_1, %c0_2] : memref<8x1xf32, #tpu.memory_space<vmem>>, vector<8x1xf32>
    %2 = vector.shape_cast %1 : vector<8x1xf32> to vector<1x8x1xf32>
    %c0_3 = arith.constant 0 : index
    %c0_4 = arith.constant 0 : index
    %c0_5 = arith.constant 0 : index
    %3 = vector.load %arg1[%c0_3, %c0_4, %c0_5] : memref<1x4x16xf32, #tpu.memory_space<vmem>>, vector<1x4x16xf32>
    %4 = vector.extract_strided_slice %3 {offsets = [0, 0, 2], sizes = [1, 4, 1], strides = [1, 1, 1]} : vector<1x4x16xf32> to vector<1x4x1xf32>
    %5 = vector.extract_strided_slice %3 {offsets = [0, 0, 1], sizes = [1, 4, 1], strides = [1, 1, 1]} : vector<1x4x16xf32> to vector<1x4x1xf32>
    %6 = vector.extract_strided_slice %3 {offsets = [0, 0, 14], sizes = [1, 4, 1], strides = [1, 1, 1]} : vector<1x4x16xf32> to vector<1x4x1xf32>
    %7 = vector.extract_strided_slice %3 {offsets = [0, 0, 13], sizes = [1, 4, 1], strides = [1, 1, 1]} : vector<1x4x16xf32> to vector<1x4x1xf32>
    %8 = tpu.concatenate %4, %5, %3, %6, %7 in 2 : vector<1x4x1xf32>, vector<1x4x1xf32>, vector<1x4x16xf32>, vector<1x4x1xf32>, vector<1x4x1xf32> -> vector<1x4x20xf32>
    %9 = vector.extract_strided_slice %8 {offsets = [0, 0, 2], sizes = [1, 4, 16], strides = [1, 1, 1]} : vector<1x4x20xf32> to vector<1x4x16xf32>
    %10 = vector.extract_strided_slice %8 {offsets = [0, 0, 1], sizes = [1, 4, 16], strides = [1, 1, 1]} : vector<1x4x20xf32> to vector<1x4x16xf32>
    %11 = vector.extract_strided_slice %8 {offsets = [0, 0, 2], sizes = [1, 4, 16], strides = [1, 1, 1]} : vector<1x4x20xf32> to vector<1x4x16xf32>
    %12 = vector.extract_strided_slice %8 {offsets = [0, 0, 3], sizes = [1, 4, 16], strides = [1, 1, 1]} : vector<1x4x20xf32> to vector<1x4x16xf32>
    %13 = vector.extract_strided_slice %8 {offsets = [0, 0, 0], sizes = [1, 4, 16], strides = [1, 1, 1]} : vector<1x4x20xf32> to vector<1x4x16xf32>
    %14 = vector.extract_strided_slice %8 {offsets = [0, 0, 1], sizes = [1, 4, 16], strides = [1, 1, 1]} : vector<1x4x20xf32> to vector<1x4x16xf32>
    %15 = vector.extract_strided_slice %8 {offsets = [0, 0, 2], sizes = [1, 4, 16], strides = [1, 1, 1]} : vector<1x4x20xf32> to vector<1x4x16xf32>
    %16 = vector.extract_strided_slice %8 {offsets = [0, 0, 3], sizes = [1, 4, 16], strides = [1, 1, 1]} : vector<1x4x20xf32> to vector<1x4x16xf32>
    %17 = vector.extract_strided_slice %8 {offsets = [0, 0, 4], sizes = [1, 4, 16], strides = [1, 1, 1]} : vector<1x4x20xf32> to vector<1x4x16xf32>
    %cst = arith.constant 1.000000e+00 : f32
    %18 = vector.broadcast %cst : f32 to vector<1x1x16xf32>
    %19 = tpu.concatenate %9, %10, %11, %12, %13, %14, %15, %16, %17, %18 in 1 : vector<1x4x16xf32>, vector<1x4x16xf32>, vector<1x4x16xf32>, vector<1x4x16xf32>, vector<1x4x16xf32>, vector<1x4x16xf32>, vector<1x4x16xf32>, vector<1x4x16xf32>, vector<1x4x16xf32>, vector<1x1x16xf32> -> vector<1x37x16xf32>
    %20 = vector.shape_cast %0 : vector<8x37xf32> to vector<1x8x37xf32>
    %cst_6 = arith.constant dense<0.000000e+00> : vector<1x8x16xf32>
    %21 = tpu.matmul %20, %19, %cst_6 {dimension_numbers = #tpu.dot_dimension_numbers<[2], [1], [1], [2], [0, 0, 0, 1, 1, 2], [0], [0]>} : vector<1x8x37xf32>, vector<1x37x16xf32>, vector<1x8x16xf32> -> vector<1x8x16xf32>
    %cst_7 = arith.constant 0.000000e+00 : f32
    %22 = vector.broadcast %cst_7 : f32 to vector<1x8x16xf32>
    %23 = arith.cmpf ogt, %21, %22 : vector<1x8x16xf32>
    %24 = vector.broadcast %2 : vector<1x8x1xf32> to vector<1x8x16xf32>
    %25 = arith.mulf %24, %21 : vector<1x8x16xf32>
    %26 = arith.select %23, %21, %25 : vector<1x8x16xi1>, vector<1x8x16xf32>
    %c0_8 = arith.constant 0 : index
    %c0_9 = arith.constant 0 : index
    %c0_10 = arith.constant 0 : index
    %27 = vector.load %arg4[%c0_8, %c0_9, %c0_10] : memref<1x8x16xf32, #tpu.memory_space<vmem>>, vector<1x8x16xf32>
    tpu.vector_store %arg4[%c0_8, %c0_9, %c0_10], %26 {strides = array<i32>} : memref<1x8x16xf32, #tpu.memory_space<vmem>>, vector<1x8x16xf32>,
    return
  }
  func.func @transform_0(%arg0: i32) -> (i32, i32, i32) {
    %c0_i32 = arith.constant 0 : i32
    %c0_i32_0 = arith.constant 0 : i32
    %c0_i32_1 = arith.constant 0 : i32
    return %arg0, %c0_i32, %c0_i32_0 : i32, i32, i32
  }
  func.func @transform_1(%arg0: i32) -> (i32, i32) {
    %c0_i32 = arith.constant 0 : i32
    %c0_i32_0 = arith.constant 0 : i32
    %c0_i32_1 = arith.constant 0 : i32
    return %c0_i32, %c0_i32_0 : i32, i32
  }
  func.func @transform_2(%arg0: i32) -> (i32, i32) {
    %c0_i32 = arith.constant 0 : i32
    %c0_i32_0 = arith.constant 0 : i32
    %c0_i32_1 = arith.constant 0 : i32
    return %c0_i32, %c0_i32_0 : i32, i32
  }
  func.func @transform_3(%arg0: i32) -> (i32, i32, i32) {
    %c0_i32 = arith.constant 0 : i32
    %c0_i32_0 = arith.constant 0 : i32
    %c0_i32_1 = arith.constant 0 : i32
    return %arg0, %c0_i32, %c0_i32_0 : i32, i32, i32
  }
}

</mosaic_0001>

<llo_original>
// kernel: tpu_custom_call.1
$region0: #{tpu_custom_call.1}
  #allocation0 [shape = 'u32[]', space=smem, size = 0x4, offset = 0x4, fixed_abs, tag = 'smem constant byte address 0x4 - core index']
  #allocation1 [shape = 'u32[144,128]{1,0:T(1,128)}', space=vmem, size = 0x12000, scoped, tag = 'internal scratch']
  %s0 = inlined_call_operand.vmem [shape: f32[2,4,16], index: 0, kind: input, shape index: {}]
  %s1 = inlined_call_operand.hbm [shape: f32[8,37], index: 1, kind: input, shape index: {}]
  %s2 = inlined_call_operand.vmem [shape: f32[8,1], index: 2, kind: input, shape index: {}]
  %s3 = inlined_call_operand.hbm [shape: f32[2,8,16], index: 3, kind: output, shape index: {}]
  %s4 = sld [smem:[#allocation0]]
  $region49: #{tpu_custom_call.1} parent=0
    _
  %s6 = ssub.s32 1, %s4
  %s7 = scalar_select 0, %s6, %s4
  $region1: #{tpu_custom_call.1} parent=0
    #allocation2 [shape = 'u8[4096]{0}', space=vmem, size = 0x1000, scoped, tag = 'input window, operand 1, single buffered']
    #allocation3 [shape = 's32[2]{0}', space=sflag, size = 0x8, scoped, tag = 'scoped memory for tpu_custom_call.1']
    #allocation4 [shape = 's32[2]{0}', space=sflag, size = 0x8, scoped, tag = 'scoped memory for tpu_custom_call.1']
    #allocation5 [shape = 'u8[8192]{0}', space=vmem, size = 0x2000, scoped, tag = 'output window, operand 0']
    %8 = vsyncpa [#allocation3], 0
    %9 = vsyncpa [#allocation4], 0
    %s10 = scalar_lea.sflag [#allocation4], 1
    %11 = vsyncpa %s10, 0
    loop: start=0, step=1, limit=4
    $region2: #{tpu_custom_call.1} parent=1 // loop_pre_header
      _
    $region3: #{tpu_custom_call.1} parent=1 // loop_header
      %s13 = sphi 0, %s17
      %p14 = scmp.ge.s32.totalorder %s13, 4
      %s23 = sphi 0, %s25
      %s26 = sphi 0, %s23
      %s27 = sphi 0, %s26
      %s43 = sphi 0, %s27
      %s47 = sphi 0, %s47
      %s49 = sphi 0, %s47
      %s50 = sphi 0, %s49
      %s64 = sphi 0, %s50
      %s68 = sphi 0, %s68
      %s70 = sphi 0, %s68
      %s71 = sphi 0, %s70
      %s85 = sphi 0, %s71
      %s91 = sphi 0, %s93
      %s94 = sphi 0, %s91
      %s95 = sphi 0, %s94
      %s111 = sphi 0, %s95
    $region4: #{tpu_custom_call.1} parent=1 // loop_header_branch
      %16 = sbr.rel (%p14) target = $region8
    $region5: #{tpu_custom_call.1} parent=1 // loop_body
      %s18 = ssub.s32 %s13, 1
      %s19 = ssub.s32 %s13, 2
      %s20 = sadd.s32 %s13, 1
      %s21 = ssub.s32 %s13, %s20
      %p22 = scmp.eq.s32.totalorder %s21, 0
      %s24 = sadd.s32 %s23, 1
      %s25 = scalar_select %p22, %s23, %s24
      %p28 = pneg %p22
      %p29 = scmp.eq.s32.totalorder %s13, 1
      %p30 = por %p28, %p29
      %p31 = scmp.ne.s32.totalorder %s23, %s26
      %p32 = scmp.eq.s32.totalorder %s13, 0
      %p33 = por %p31, %p32
      %p34 = scmp.ne.s32.totalorder %s23, %s26
      %p35 = scmp.eq.s32.totalorder %s18, 1
      %p36 = por %p34, %p35
      %p37 = scmp.ne.s32.totalorder %s26, %s27
      %p38 = scmp.eq.s32.totalorder %s18, 0
      %p39 = por %p37, %p38
      %p40 = scmp.ne.s32.totalorder %s26, %s27
      %p41 = scmp.eq.s32.totalorder %s19, 1
      %p42 = por %p40, %p41
      %p44 = scmp.ne.s32.totalorder %s27, %s43
      %p45 = scmp.eq.s32.totalorder %s19, 0
      %p46 = por %p44, %p45
      %s48 = sadd.s32 %s47, 1
      %p51 = scmp.eq.s32.totalorder %s13, 1
      %p52 = scmp.ne.s32.totalorder %s47, %s49
      %p53 = scmp.eq.s32.totalorder %s13, 0
      %p54 = por %p52, %p53
      %p55 = scmp.ne.s32.totalorder %s47, %s49
      %p56 = scmp.eq.s32.totalorder %s18, 1
      %p57 = por %p55, %p56
      %p58 = scmp.ne.s32.totalorder %s49, %s50
      %p59 = scmp.eq.s32.totalorder %s18, 0
      %p60 = por %p58, %p59
      %p61 = scmp.ne.s32.totalorder %s49, %s50
      %p62 = scmp.eq.s32.totalorder %s19, 1
      %p63 = por %p61, %p62
      %p65 = scmp.ne.s32.totalorder %s50, %s64
      %p66 = scmp.eq.s32.totalorder %s19, 0
      %p67 = por %p65, %p66
      %s69 = sadd.s32 %s68, 1
      %p72 = scmp.eq.s32.totalorder %s13, 1
      %p73 = scmp.ne.s32.totalorder %s68, %s70
      %p74 = scmp.eq.s32.totalorder %s13, 0
      %p75 = por %p73, %p74
      %p76 = scmp.ne.s32.totalorder %s68, %s70
      %p77 = scmp.eq.s32.totalorder %s18, 1
      %p78 = por %p76, %p77
      %p79 = scmp.ne.s32.totalorder %s70, %s71
      %p80 = scmp.eq.s32.totalorder %s18, 0
      %p81 = por %p79, %p80
      %p82 = scmp.ne.s32.totalorder %s70, %s71
      %p83 = scmp.eq.s32.totalorder %s19, 1
      %p84 = por %p82, %p83
      %p86 = scmp.ne.s32.totalorder %s71, %s85
      %p87 = scmp.eq.s32.totalorder %s19, 0
      %p88 = por %p86, %p87
      %s89 = ssub.s32 %s13, %s20
      %p90 = scmp.eq.s32.totalorder %s89, 0
      %s92 = sadd.s32 %s91, 1
      %s93 = scalar_select %p90, %s91, %s92
      %p96 = pneg %p90
      %p97 = scmp.eq.s32.totalorder %s13, 1
      %p98 = por %p96, %p97
      %p99 = scmp.ne.s32.totalorder %s91, %s94
      %p100 = scmp.eq.s32.totalorder %s13, 0
      %p101 = por %p99, %p100
      %p102 = scmp.ne.s32.totalorder %s91, %s94
      %p103 = scmp.eq.s32.totalorder %s18, 1
      %p104 = por %p102, %p103
      %p105 = scmp.ne.s32.totalorder %s94, %s95
      %p106 = scmp.eq.s32.totalorder %s18, 0
      %p107 = por %p105, %p106
      %p108 = scmp.ne.s32.totalorder %s94, %s95
      %p109 = scmp.eq.s32.totalorder %s19, 1
      %p110 = por %p108, %p109
      %p112 = scmp.ne.s32.totalorder %s95, %s111
      %p113 = scmp.eq.s32.totalorder %s19, 0
      %p114 = por %p112, %p113
      %p115 = scmp.le.s32.totalorder 1, %s13
      %p116 = scmp.lt.s32.totalorder %s13, 3
      %p117 = pnand %p115, %p116
      %p118 = pneg %p117
      // Predicated region
      $region9: #{tpu_custom_call.1} parent=5 // pred_check
        _
      $region10: #{tpu_custom_call.1} parent=5 // pred_check_branch
        %120 = sbr.rel (%p117) target = $region12
      $region11: #{tpu_custom_call.1} parent=5 // pred_region
        %s121 = ssub.s32 %s13, 1
        // Predicated region
        $region13: #{tpu_custom_call.1} parent=11 // pred_check
          %p122 = pneg %p60
        $region14: #{tpu_custom_call.1} parent=11 // pred_check_branch
          %124 = sbr.rel (%p122) target = $region16
        $region15: #{tpu_custom_call.1} parent=11 // pred_region
          %s126 = ssub.s32 128, 128
          %127 = vsyncadd [#allocation3], %s126
          %s129 = sshll.u32 [#allocation2], 4
          %s130 = int_to_ptr.vmem [resolvable:$true] %s129
          %132 = dma.hbm_to_vmem [thread:$0]  %s1, 128, %s130, [#allocation3]
        $region16: #{tpu_custom_call.1} parent=11 // pred_fallthru
          _
        // Predicated region
        $region17: #{tpu_custom_call.1} parent=11 // pred_check
          %p133 = pneg %p81
        $region18: #{tpu_custom_call.1} parent=11 // pred_check_branch
          %135 = sbr.rel (%p133) target = $region20
        $region19: #{tpu_custom_call.1} parent=11 // pred_region
          _
        $region20: #{tpu_custom_call.1} parent=11 // pred_fallthru
          _
      $region12: #{tpu_custom_call.1} parent=5 // pred_fallthru
        _
      %p136 = scmp.lt.s32.totalorder %s13, 2
      // Predicated region
      $region21: #{tpu_custom_call.1} parent=5 // pred_check
        %p137 = pneg %p136
      $region22: #{tpu_custom_call.1} parent=5 // pred_check_branch
        %139 = sbr.rel (%p137) target = $region24
      $region23: #{tpu_custom_call.1} parent=5 // pred_region
        // Predicated region
        $region25: #{tpu_custom_call.1} parent=23 // pred_check
          %p140 = pneg %p33
        $region26: #{tpu_custom_call.1} parent=23 // pred_check_branch
          %142 = sbr.rel (%p140) target = $region28
        $region27: #{tpu_custom_call.1} parent=23 // pred_region
          %p143 = scmp.lt.s32.totalorder %s13, 1
          %s144 = scalar_select %p143, %s13, 1
          %s145 = smul.addr %s144, 4
          %s146 = scalar_lea.vmem %s0, %s145
        $region28: #{tpu_custom_call.1} parent=23 // pred_fallthru
          _
      $region24: #{tpu_custom_call.1} parent=5 // pred_fallthru
        _
      %p147 = scmp.le.s32.totalorder 1, %s13
      %p148 = scmp.lt.s32.totalorder %s13, 3
      %p149 = pnand %p147, %p148
      %p150 = pneg %p149
      // Predicated region
      $region29: #{tpu_custom_call.1} parent=5 // pred_check
        _
      $region30: #{tpu_custom_call.1} parent=5 // pred_check_branch
        %152 = sbr.rel (%p149) target = $region32
      $region31: #{tpu_custom_call.1} parent=5 // pred_region
        %s153 = ssub.s32 %s13, 1
        // Predicated region
        $region33: #{tpu_custom_call.1} parent=31 // pred_check
          %p154 = pneg %p60
        $region34: #{tpu_custom_call.1} parent=31 // pred_check_branch
          %156 = sbr.rel (%p154) target = $region36
        $region35: #{tpu_custom_call.1} parent=31 // pred_region
          %157 = dma.done [#allocation3], 128
        $region36: #{tpu_custom_call.1} parent=31 // pred_fallthru
          _
        %p158 = scmp.lt.s32.totalorder %s18, 1
        %s159 = scalar_select %p158, %s18, 1
        %s160 = smul.addr %s159, 4
        %s161 = scalar_lea.vmem %s0, %s160
        %p162 = pneg %p39
        %p163 = pneg %p36
        %p164 = pneg %p60
        %p165 = pneg %p57
        %p166 = pneg %p81
        %p167 = pneg %p78
        %p168 = pneg %p107
        %p169 = pneg %p104
        %s170 = sand.u32 %s94, 1
        %s171 = scalar_lea.sflag [#allocation4], %s170
        %s172 = sand.u32 %s94, 1
        %s173 = smul.addr %s172, 8
        %s174 = scalar_lea.vmem [#allocation5], %s173
        %p175 = scmp.lt.s32.totalorder %s18, 1
        %s176 = scalar_select %p175, %s18, 1
        %s177 = smul.addr %s176, 4
        %s178 = scalar_lea.vmem %s0, %s177
        %v179 = vld [vmem:[#allocation2] sm:$0xff]
        %v180 = vld [vmem:[%s2] sm:$0xff]
        %v181 = vld [vmem:[%s178] sm:$0xf]
        %183 = vrot.lane.b32.xlu0 %v181, 126
        %v184 = vpop.permute.xlu0 %183
        %186 = vrot.lane.b32.xlu0 %v181, 2
        %v187 = vpop.permute.xlu0 %186
        %189 = vrot.lane.b32.xlu0 %v181, 4
        %v190 = vpop.permute.xlu0 %189
        %192 = vrot.lane.b32.xlu0 %v181, 6
        %v193 = vpop.permute.xlu0 %192
        %vm195 = vcmask 7168
        %v196 = vsel %vm195, %v184, %v181
        %vm197 = vcmask 15360
        %v198 = vsel %vm197, %v196, %v187
        %vm199 = vcmask 146432
        %v200 = vsel %vm199, %v198, %v190
        %vm201 = vcmask 154624
        %v202 = vsel %vm201, %v200, %v193
        %v204 = vrot.slane %v202, 4
        %205 = vrot.lane.b32.xlu0 %v204, 1
        %v206 = vpop.permute.xlu0 %205
        %208 = vrot.lane.b32.xlu0 %v204, 127
        %v209 = vpop.permute.xlu0 %208
        %211 = vrot.lane.b32.xlu0 %v202, 2
        %v212 = vpop.permute.xlu0 %211
        %214 = vrot.lane.b32.xlu0 %v202, 126
        %v215 = vpop.permute.xlu0 %214
        %vm217 = vcmask 1043456
        %v218 = vsel %vm217, %v202, %v206
        %v219 = vsel %vm217, %v202, %v209
        %v220 = vsel %vm217, %v212, %v206
        %v221 = vsel %vm217, %v215, 1.0
        %226 = vrot.lane.b32.xlu0 %v218, 126
        %v227 = vpop.permute.xlu0 %226
        %228 = vrot.lane.b32.xlu0 %v219, 126
        %v229 = vpop.permute.xlu0 %228
        %230 = vrot.lane.b32.xlu0 %v220, 126
        %v231 = vpop.permute.xlu0 %230
        %232 = vrot.lane.b32.xlu0 %v221, 126
        %v233 = vpop.permute.xlu0 %232
        %vm237 = vcmask 302080
        %v239 = vsel %vm237, %v179, 0
        %vm241 = vcmask 1044480
        %v242 = vsel %vm241, %v233, 0
        %244 = vmatprep.subr.mxu0 0.0
        %245 = vmatpush1.msra.mxu0 %v227
        %246 = vmatprep.subr.mxu0 0.0
        %247 = vmatpush1.msra.mxu0 %v229
        %248 = vmatprep.subr.mxu0 0.0
        %249 = vmatpush1.msra.mxu0 %v231
        %250 = vmatprep.subr.mxu0 0.0
        %251 = vmatpush1.msra.mxu0 %v229
        %252 = vmatprep.subr.mxu0 0.0
        %253 = vmatpush1.msra.mxu0 %v242
        %254 = vmatprep.subr.mxu0 0.0
        %255 = vmatpush1.msra.mxu0 0.0
        %256 = vmatprep.subr.mxu0 0.0
        %257 = vmatpush1.msra.mxu0 0.0
        %258 = vmatprep.subr.mxu0 0.0
        %259 = vmatpush1.msra.mxu0 0.0
        %260 = vmatprep.subr.mxu0 0.0
        %261 = vmatpush1.msra.mxu0 0.0
        %262 = vmatprep.subr.mxu0 0.0
        %263 = vmatpush1.msra.mxu0 0.0
        %264 = vmatprep.subr.mxu0 0.0
        %265 = vmatpush1.msra.mxu0 0.0
        %266 = vmatprep.subr.mxu0 0.0
        %267 = vmatpush1.msra.mxu0 0.0
        %268 = vmatprep.subr.mxu0 0.0
        %269 = vmatpush1.msra.mxu0 0.0
        %270 = vmatprep.subr.mxu0 0.0
        %271 = vmatpush1.msra.mxu0 0.0
        %272 = vmatprep.subr.mxu0 0.0
        %273 = vmatpush1.msra.mxu0 0.0
        %274 = vmatprep.subr.mxu0 0.0
        %275 = vmatpush1.msra.mxu0 0.0
        %276 = vmatprep.subr.mxu0 0.0
        %277 = vmatpush1.msra.mxu0 0.0
        %278 = vmatprep.subr.mxu0 0.0
        %279 = vmatpush1.msra.mxu0 0.0
        %280 = vmatprep.subr.mxu0 0.0
        %281 = vmatpush1.msra.mxu0 0.0
        %282 = vmatprep.subr.mxu0 0.0
        %283 = vmatpush1.msra.mxu0 0.0
        %284 = vmatprep.subr.mxu0 0.0
        %285 = vmatpush1.msra.mxu0 0.0
        %286 = vmatprep.subr.mxu0 0.0
        %287 = vmatpush1.msra.mxu0 0.0
        %288 = vmatprep.subr.mxu0 0.0
        %289 = vmatpush1.msra.mxu0 0.0
        %290 = vmatprep.subr.mxu0 0.0
        %291 = vmatpush1.msra.mxu0 0.0
        %292 = vmatprep.subr.mxu0 0.0
        %293 = vmatpush1.msra.mxu0 0.0
        %294 = vmatprep.subr.mxu0 0.0
        %295 = vmatpush1.msra.mxu0 0.0
        %296 = vmatprep.subr.mxu0 0.0
        %297 = vmatpush1.msra.mxu0 0.0
        %298 = vmatprep.subr.mxu0 0.0
        %299 = vmatpush1.msra.mxu0 0.0
        %300 = vmatprep.subr.mxu0 0.0
        %301 = vmatpush1.msra.mxu0 0.0
        %302 = vmatprep.subr.mxu0 0.0
        %303 = vmatpush1.msra.mxu0 0.0
        %304 = vmatprep.subr.mxu0 0.0
        %305 = vmatpush1.msra.mxu0 0.0
        %306 = vmatprep.subr.mxu0 0.0
        %307 = vmatpush1.msra.mxu0 0.0
        %308 = vmatprep.mubr.f32.mxu0 0.0
        %309 = vmatmul.mubr.f32.gmra.mrb[0].mxu0 %v239
        %v310 = vpop.f32.mrb[0].mxu0
        %v311 = vadd.f32 0.0, %v310
        %v312 = vpop.f32.mrb[0].mxu0
        %313 = vdwg.mxu0
        %vm314 = vcmp.gt.f32.partialorder %v311, 0.0
        %316 = vset.pattern.permute.xlu0 0
        %317 = vperm.xlu0 %316, %v180
        %v318 = vpop.permute.xlu0 %317
        %v320 = vmul.f32 %v318, %v311
        %v321 = vsel %vm314, %v311, %v320
        %vm322 = vcmask 130048
        %323 = vst.msk [vmem:[%s174] sm:$0xff] %vm322, %v321
        %s324 = sand.u32 %s94, 1
        %s325 = scalar_lea.sflag [#allocation4], %s324
        %s326 = sand.u32 %s94, 1
        %s327 = smul.addr %s326, 8
        %s328 = scalar_lea.vmem [#allocation5], %s327
        // Predicated region
        $region37: #{tpu_custom_call.1} parent=31 // pred_check
          %p329 = pneg %p104
        $region38: #{tpu_custom_call.1} parent=31 // pred_check_branch
          %331 = sbr.rel (%p329) target = $region40
        $region39: #{tpu_custom_call.1} parent=31 // pred_region
          %s333 = ssub.s32 128, 128
          %334 = vsyncadd %s325, %s333
          %s335 = smul.addr %s18, 128
          %s336 = scalar_lea.hbm %s3, %s335
          %s338 = sshll.u32 %s328, 4
          %s339 = int_to_ptr.vmem [resolvable:$true] %s338
          %341 = dma.vmem_to_hbm [thread:$0]  %s339, 128, %s336, %s325
        $region40: #{tpu_custom_call.1} parent=31 // pred_fallthru
          _
      $region32: #{tpu_custom_call.1} parent=5 // pred_fallthru
        _
      %p342 = scmp.le.s32.totalorder 2, %s13
      // Predicated region
      $region41: #{tpu_custom_call.1} parent=5 // pred_check
        %p343 = pneg %p342
      $region42: #{tpu_custom_call.1} parent=5 // pred_check_branch
        %345 = sbr.rel (%p343) target = $region44
      $region43: #{tpu_custom_call.1} parent=5 // pred_region
        %s346 = ssub.s32 %s13, 2
        // Predicated region
        $region45: #{tpu_custom_call.1} parent=43 // pred_check
          %p347 = pneg %p110
        $region46: #{tpu_custom_call.1} parent=43 // pred_check_branch
          %349 = sbr.rel (%p347) target = $region48
        $region47: #{tpu_custom_call.1} parent=43 // pred_region
          %s350 = sand.u32 %s95, 1
          %s351 = scalar_lea.sflag [#allocation4], %s350
          %s352 = sand.u32 %s95, 1
          %s353 = smul.addr %s352, 8
          %s354 = scalar_lea.vmem [#allocation5], %s353
          %355 = dma.done %s351, 128
        $region48: #{tpu_custom_call.1} parent=43 // pred_fallthru
          _
      $region44: #{tpu_custom_call.1} parent=5 // pred_fallthru
        _
    $region6: #{tpu_custom_call.1} parent=1 // loop_footer
      %s17 = sadd.s32 1, %s13
    $region7: #{tpu_custom_call.1} parent=1 // loop_footer_branch
      %12 = sbr.rel target = $region3
    $region8: #{tpu_custom_call.1} parent=1 // loop_exit
      _
    %356 = vsyncpa [#allocation3], 1
    %s357 = scalar_lea.sflag [#allocation3], 1
    %358 = vsyncpa %s357, 1
    %359 = vsyncpa [#allocation4], 1
    %s360 = scalar_lea.sflag [#allocation4], 1
    %361 = vsyncpa %s360, 1

</llo_original>
